<compile_context>
chip_gen: v6e
topology: v6e:2x2x1
jax: 0.10.0
libtpu: 0.0.40
codegen_flags: <defaults>
</compile_context>

<pallas_src>
import jax
import jax.numpy as jnp
from jax.experimental import pallas as pl
from jax.experimental.pallas import tpu as pltpu


def _round_up(n, m):
    return (n + m - 1) // m * m


def highway_kernel(x_ref, w_ref, b_ref, o_ref):
    # x_ref: (TB, E_in) in the matmul dtype; w_ref: (E_in, E_pad) matmul dtype;
    # b_ref: (1, E_pad) f32; o_ref: (TB, E_pad) in the output dtype.
    proj = jnp.dot(x_ref[...], w_ref[...], preferred_element_type=jnp.float32)
    proj = proj + b_ref[...]          # epilogue kept in f32 (v5e has no bf16 VPU)
    proj = jnp.maximum(proj, 0.0)     # relu
    o_ref[...] = proj.astype(o_ref.dtype)


def prepare_highway_params(w_proj, b_proj, w_gate, b_gate,
                           matmul_dtype=jnp.float32):
    """One-time parameter prep — call OUTSIDE the per-step hot path.

    - W_proj (out, in) -> transposed to (in, out) and zero-padded along the
      out dim to a multiple of 128 so the kernel output is lane dense.
    - bias -> (1, E_pad) f32 tile.
    - W cast to `matmul_dtype` (bf16 recommended on v5e/v6e MXUs).
    - W_gate / b_gate are accepted for interface parity with the module but
      unused: the reference blend g*p + (1-g)*p is identically p, so they
      cannot affect the forward output.
    """
    del w_gate, b_gate  # dead parameters (no-op gate in the reference forward)
    e_out, e_in = w_proj.shape
    e_pad = _round_up(e_out, 128)
    w = jnp.zeros((e_in, e_pad), matmul_dtype)
    w = w.at[:, :e_out].set(w_proj.T.astype(matmul_dtype))
    b = jnp.zeros((1, e_pad), jnp.float32)
    b = b.at[:, :e_out].set(b_proj.astype(jnp.float32))
    return w, b


def highway_forward(x, w_prepped, b_prepped):
    """x: (B, E) float32.  w_prepped: (E, E_pad), b_prepped: (1, E_pad) from
    prepare_highway_params.  Returns (B, E) in x.dtype."""
    B, E = x.shape
    E_pad = w_prepped.shape[1]
    mm_dtype = w_prepped.dtype
    x_mm = x.astype(mm_dtype)  # on the bf16 path this also halves x DMA traffic

    # Batch tile: largest multiple-of-8 tile up to 256 rows so Pallas can
    # software-pipeline the next x tile's DMA / previous out tile's writeback
    # against the current MXU work.  (At these sizes the VMEM footprint is a
    # few hundred KiB — far below even v7x's 64 MiB, so no vmem_limit needed.)
    if B % 8 == 0:
        tb = min(B, 256)
    else:
        tb = B  # full-extent block for small/ragged batches (no pipelining)
    grid = (pl.cdiv(B, tb),)

    out_pad = pl.pallas_call(
        highway_kernel,
        out_shape=jax.ShapeDtypeStruct((B, E_pad), x.dtype),
        grid_spec=pltpu.PrefetchScalarGridSpec(
            num_scalar_prefetch=0,
            grid=grid,
            in_specs=[
                pl.BlockSpec((tb, E), lambda i: (i, 0)),      # x tile (pipelined)
                pl.BlockSpec((E, E_pad), lambda i: (0, 0)),   # weights (resident)
                pl.BlockSpec((1, E_pad), lambda i: (0, 0)),   # bias (resident)
            ],
            out_specs=pl.BlockSpec((tb, E_pad), lambda i: (i, 0)),
        ),
        compiler_params=pltpu.CompilerParams(
            # Batch tiles are independent -> shard them across TensorCores
            # (2 per chip on v7x); harmless on single-TC v5e/v6e.
            dimension_semantics=("parallel",)),
    )(x_mm, w_prepped, b_prepped)

    return out_pad[:, :E]  # drop the lane padding (module is square: out == in)


if __name__ == "__main__":
    B, E = 8, 64  # batch_size, embed_size (e_word)
    key = jax.random.PRNGKey(0)
    kx, kwp, kbp, kwg, kbg = jax.random.split(key, 5)

    x = jax.random.normal(kx, (B, E), dtype=jnp.float32)
    bound = 1.0 / (E ** 0.5)  # nn.Linear default init range
    w_proj = jax.random.uniform(kwp, (E, E), jnp.float32, -bound, bound)
    b_proj = jax.random.uniform(kbp, (E,), jnp.float32, -bound, bound)
    w_gate = jax.random.uniform(kwg, (E, E), jnp.float32, -bound, bound)
    b_gate = jax.random.uniform(kbg, (E,), jnp.float32, -bound, bound)

    # Pure-JAX reference == the PyTorch forward expression.
    proj = jnp.maximum(x @ w_proj.T + b_proj, 0.0)
    gate = jax.nn.sigmoid(x @ w_gate.T + b_gate)
    ref = gate * proj + (1.0 - gate) * proj  # identically == proj

    # 1) f32 MXU path: numerically faithful to the f32 PyTorch module.
    wp32, bp32 = prepare_highway_params(w_proj, b_proj, w_gate, b_gate,
                                        matmul_dtype=jnp.float32)
    out32 = jax.block_until_ready(highway_forward(x, wp32, bp32))
    assert out32.shape == (B, E)
    assert jnp.allclose(out32, ref, atol=1e-5, rtol=1e-5)

    # 2) bf16 MXU path (recommended on v5e/v6e for MXU rate / weight DMA):
    #    bf16 matmul inputs, f32 accumulate, f32 epilogue.
    wp16, bp16 = prepare_highway_params(w_proj, b_proj, w_gate, b_gate,
                                        matmul_dtype=jnp.bfloat16)
    out16 = jax.block_until_ready(highway_forward(x, wp16, bp16))
    assert out16.shape == (B, E)
    assert jnp.allclose(out16, ref, atol=5e-2, rtol=5e-2)

    print("KERNEL_OK")
</pallas_src>

<mosaic_0001>
module attributes {stable_mosaic.version = 11 : i64} {
  func.func @highway_kernel(%arg0: i32, %arg1: memref<8x64xf32, #tpu.memory_space<vmem>>, %arg2: memref<64x128xf32, #tpu.memory_space<vmem>>, %arg3: memref<1x128xf32, #tpu.memory_space<vmem>>, %arg4: memref<8x128xf32, #tpu.memory_space<vmem>>) attributes {dimension_semantics = [#tpu.dimension_semantics<parallel>], iteration_bounds = array<i64: 1>, scalar_prefetch = 0 : i64, scratch_operands = 0 : i64, tpu.core_type = #tpu.core_type<tc>, window_params = [{transform_indices = @transform_0, window_bounds = array<i64: 8, 64>}, {pipeline_mode = #tpu.pipeline_mode<synchronous>, transform_indices = @transform_1, window_bounds = array<i64: 64, 128>}, {pipeline_mode = #tpu.pipeline_mode<synchronous>, transform_indices = @transform_2, window_bounds = array<i64: 1, 128>}, {transform_indices = @transform_3, window_bounds = array<i64: 8, 128>}]} {
    %c0 = arith.constant 0 : index
    %c0_0 = arith.constant 0 : index
    %0 = vector.load %arg1[%c0, %c0_0] : memref<8x64xf32, #tpu.memory_space<vmem>>, vector<8x64xf32>
    %c0_1 = arith.constant 0 : index
    %c0_2 = arith.constant 0 : index
    %1 = vector.load %arg2[%c0_1, %c0_2] : memref<64x128xf32, #tpu.memory_space<vmem>>, vector<64x128xf32>
    %cst = arith.constant dense<0.000000e+00> : vector<8x128xf32>
    %2 = tpu.matmul %0, %1, %cst {dimension_numbers = #tpu.dot_dimension_numbers<[1], [0], [0], [1], [0, 0, 1, 1], [], []>} : vector<8x64xf32>, vector<64x128xf32>, vector<8x128xf32> -> vector<8x128xf32>
    %c0_3 = arith.constant 0 : index
    %c0_4 = arith.constant 0 : index
    %3 = vector.load %arg3[%c0_3, %c0_4] : memref<1x128xf32, #tpu.memory_space<vmem>>, vector<1x128xf32>
    %4 = vector.broadcast %3 : vector<1x128xf32> to vector<8x128xf32>
    %5 = arith.addf %2, %4 : vector<8x128xf32>
    %cst_5 = arith.constant 0.000000e+00 : f32
    %6 = vector.broadcast %cst_5 : f32 to vector<8x128xf32>
    %7 = arith.maximumf %5, %6 : vector<8x128xf32>
    %c0_6 = arith.constant 0 : index
    %c0_7 = arith.constant 0 : index
    %8 = vector.load %arg4[%c0_6, %c0_7] : memref<8x128xf32, #tpu.memory_space<vmem>>, vector<8x128xf32>
    tpu.vector_store %arg4[%c0_6, %c0_7], %7 {strides = array<i32>} : memref<8x128xf32, #tpu.memory_space<vmem>>, vector<8x128xf32>,
    return
  }
  func.func @transform_0(%arg0: i32) -> (i32, i32) {
    %c0_i32 = arith.constant 0 : i32
    %c0_i32_0 = arith.constant 0 : i32
    return %arg0, %c0_i32 : i32, i32
  }
  func.func @transform_1(%arg0: i32) -> (i32, i32) {
    %c0_i32 = arith.constant 0 : i32
    %c0_i32_0 = arith.constant 0 : i32
    %c0_i32_1 = arith.constant 0 : i32
    return %c0_i32, %c0_i32_0 : i32, i32
  }
  func.func @transform_2(%arg0: i32) -> (i32, i32) {
    %c0_i32 = arith.constant 0 : i32
    %c0_i32_0 = arith.constant 0 : i32
    %c0_i32_1 = arith.constant 0 : i32
    return %c0_i32, %c0_i32_0 : i32, i32
  }
  func.func @transform_3(%arg0: i32) -> (i32, i32) {
    %c0_i32 = arith.constant 0 : i32
    %c0_i32_0 = arith.constant 0 : i32
    return %arg0, %c0_i32 : i32, i32
  }
}

</mosaic_0001>

<llo_original>
// kernel: tpu_custom_call.1
$region0: #{tpu_custom_call.1}
  #allocation0 [shape = 'u32[]', space=smem, size = 0x4, offset = 0x4, fixed_abs, tag = 'smem constant byte address 0x4 - core index']
  #allocation1 [shape = 'u32[144,128]{1,0:T(1,128)}', space=vmem, size = 0x12000, scoped, tag = 'internal scratch']
  %s0 = inlined_call_operand.hbm [shape: f32[8,64], index: 0, kind: input, shape index: {}]
  %s1 = inlined_call_operand.hbm [shape: f32[64,128], index: 1, kind: input, shape index: {}]
  %s2 = inlined_call_operand.vmem [shape: f32[1,128], index: 2, kind: input, shape index: {}]
  %s3 = inlined_call_operand.hbm [shape: f32[8,128], index: 3, kind: output, shape index: {}]
  %s4 = sld [smem:[#allocation0]]
  $region30: #{tpu_custom_call.1} parent=0
    _
  %s6 = ssub.s32 1, %s4
  %s7 = scalar_select 0, %s6, %s4
  $region1: #{tpu_custom_call.1} parent=0
    #allocation2 [shape = 'u8[4096]{0}', space=vmem, size = 0x1000, scoped, tag = 'input window, operand 0, single buffered']
    #allocation3 [shape = 's32[1]{0}', space=sflag, size = 0x4, scoped, tag = 'scoped memory for tpu_custom_call.1']
    #allocation4 [shape = 's32[1]{0}', space=sflag, size = 0x4, scoped, tag = 'scoped memory for tpu_custom_call.1']
    #allocation5 [shape = 'u8[32768]{0}', space=vmem, size = 0x8000, scoped, tag = 'input window, operand 1, single buffered']
    #allocation6 [shape = 's32[1]{0}', space=sflag, size = 0x4, scoped, tag = 'scoped memory for tpu_custom_call.1']
    #allocation7 [shape = 'u8[4096]{0}', space=vmem, size = 0x1000, scoped, tag = 'output window, operand 0, single buffered']
    %8 = vsyncpa [#allocation3], 0
    %9 = vsyncpa [#allocation6], 0
    %10 = vsyncpa [#allocation4], 0
    // Predicated region
    $region2: #{tpu_custom_call.1} parent=1 // pred_check
      _
    $region3: #{tpu_custom_call.1} parent=1 // pred_check_branch
      %12 = sbr.rel (0) target = $region5
    $region4: #{tpu_custom_call.1} parent=1 // pred_region
      %s14 = ssub.s32 128, 128
      %15 = vsyncadd [#allocation3], %s14
      %s17 = sshll.u32 [#allocation2], 4
      %s18 = int_to_ptr.vmem [resolvable:$true] %s17
      %20 = dma.hbm_to_vmem [thread:$0]  %s0, 128, %s18, [#allocation3]
    $region5: #{tpu_custom_call.1} parent=1 // pred_fallthru
      _
    // Predicated region
    $region6: #{tpu_custom_call.1} parent=1 // pred_check
      _
    $region7: #{tpu_custom_call.1} parent=1 // pred_check_branch
      %22 = sbr.rel (0) target = $region9
    $region8: #{tpu_custom_call.1} parent=1 // pred_region
      %s24 = ssub.s32 1024, 1024
      %25 = vsyncadd [#allocation6], %s24
      %s26 = sshll.u32 [#allocation5], 4
      %s27 = int_to_ptr.vmem [resolvable:$true] %s26
      %32 = dma.hbm_to_vmem [thread:$0]  %s1, 1024, %s27, [#allocation6], 128, 128, 8
    $region9: #{tpu_custom_call.1} parent=1 // pred_fallthru
      _
    // Predicated region
    $region10: #{tpu_custom_call.1} parent=1 // pred_check
      _
    $region11: #{tpu_custom_call.1} parent=1 // pred_check_branch
      %34 = sbr.rel (0) target = $region13
    $region12: #{tpu_custom_call.1} parent=1 // pred_region
      _
    $region13: #{tpu_custom_call.1} parent=1 // pred_fallthru
      _
    // Predicated region
    $region14: #{tpu_custom_call.1} parent=1 // pred_check
      _
    $region15: #{tpu_custom_call.1} parent=1 // pred_check_branch
      %36 = sbr.rel (0) target = $region17
    $region16: #{tpu_custom_call.1} parent=1 // pred_region
      %37 = dma.done [#allocation3], 128
    $region17: #{tpu_custom_call.1} parent=1 // pred_fallthru
      _
    // Predicated region
    $region18: #{tpu_custom_call.1} parent=1 // pred_check
      _
    $region19: #{tpu_custom_call.1} parent=1 // pred_check_branch
      %39 = sbr.rel (0) target = $region21
    $region20: #{tpu_custom_call.1} parent=1 // pred_region
      %40 = dma.done [#allocation6], 1024
    $region21: #{tpu_custom_call.1} parent=1 // pred_fallthru
      _
    %v41 = vld [vmem:[#allocation2] sm:$0xff]
    %v42 = vld [vmem:[#allocation5] sm:$0xff]
    %v43 = vld [vmem:[#allocation5 + $0x8] sm:$0xff]
    %v44 = vld [vmem:[#allocation5 + $0x10] sm:$0xff]
    %v45 = vld [vmem:[#allocation5 + $0x18] sm:$0xff]
    %v46 = vld [vmem:[#allocation5 + $0x20] sm:$0xff]
    %v47 = vld [vmem:[#allocation5 + $0x28] sm:$0xff]
    %v48 = vld [vmem:[#allocation5 + $0x30] sm:$0xff]
    %v49 = vld [vmem:[#allocation5 + $0x38] sm:$0xff]
    %v50 = vld [vmem:[%s2] sm:$0x1]
    %v52 = vlaneseq
    %v53 = vshrl.u32 %v52, 7
    %v54 = vsub.s32 0, %v53
    %v55 = vrot.slane %v50, %v54
    %vm57 = vcmask 523264
    %v59 = vsel %vm57, %v41, 0
    %61 = vmatprep.subr.mxu0 0.0
    %62 = vmatpush1.msra.mxu0 0.0
    %63 = vmatprep.subr.mxu0 0.0
    %64 = vmatpush1.msra.mxu0 0.0
    %65 = vmatprep.subr.mxu0 0.0
    %66 = vmatpush1.msra.mxu0 0.0
    %67 = vmatprep.subr.mxu0 0.0
    %68 = vmatpush1.msra.mxu0 0.0
    %69 = vmatprep.subr.mxu0 0.0
    %70 = vmatpush1.msra.mxu0 0.0
    %71 = vmatprep.subr.mxu0 0.0
    %72 = vmatpush1.msra.mxu0 0.0
    %73 = vmatprep.subr.mxu0 0.0
    %74 = vmatpush1.msra.mxu0 0.0
    %75 = vmatprep.subr.mxu0 0.0
    %76 = vmatpush1.msra.mxu0 0.0
    %77 = vmatprep.subr.mxu0 0.0
    %78 = vmatpush1.msra.mxu0 %v49
    %79 = vmatprep.subr.mxu0 0.0
    %80 = vmatpush1.msra.mxu0 %v48
    %81 = vmatprep.subr.mxu0 0.0
    %82 = vmatpush1.msra.mxu0 %v47
    %83 = vmatprep.subr.mxu0 0.0
    %84 = vmatpush1.msra.mxu0 %v46
    %85 = vmatprep.subr.mxu0 0.0
    %86 = vmatpush1.msra.mxu0 %v45
    %87 = vmatprep.subr.mxu0 0.0
    %88 = vmatpush1.msra.mxu0 %v44
    %89 = vmatprep.subr.mxu0 0.0
    %90 = vmatpush1.msra.mxu0 %v43
    %91 = vmatprep.subr.mxu0 0.0
    %92 = vmatpush1.msra.mxu0 %v42
    %93 = vmatprep.subr.mxu0 0.0
    %94 = vmatpush2.msra.mxu0 0.0
    %95 = vmatprep.subr.mxu0 0.0
    %96 = vmatpush2.msra.mxu0 0.0
    %97 = vmatprep.subr.mxu0 0.0
    %98 = vmatpush2.msra.mxu0 0.0
    %99 = vmatprep.subr.mxu0 0.0
    %100 = vmatpush2.msra.mxu0 0.0
    %101 = vmatprep.subr.mxu0 0.0
    %102 = vmatpush2.msra.mxu0 0.0
    %103 = vmatprep.subr.mxu0 0.0
    %104 = vmatpush2.msra.mxu0 0.0
    %105 = vmatprep.subr.mxu0 0.0
    %106 = vmatpush2.msra.mxu0 0.0
    %107 = vmatprep.subr.mxu0 0.0
    %108 = vmatpush2.msra.mxu0 0.0
    %109 = vmatprep.subr.mxu0 0.0
    %110 = vmatpush2.msra.mxu0 0.0
    %111 = vmatprep.subr.mxu0 0.0
    %112 = vmatpush2.msra.mxu0 0.0
    %113 = vmatprep.subr.mxu0 0.0
    %114 = vmatpush2.msra.mxu0 0.0
    %115 = vmatprep.subr.mxu0 0.0
    %116 = vmatpush2.msra.mxu0 0.0
    %117 = vmatprep.subr.mxu0 0.0
    %118 = vmatpush2.msra.mxu0 0.0
    %119 = vmatprep.subr.mxu0 0.0
    %120 = vmatpush2.msra.mxu0 0.0
    %121 = vmatprep.subr.mxu0 0.0
    %122 = vmatpush2.msra.mxu0 0.0
    %123 = vmatprep.subr.mxu0 0.0
    %124 = vmatpush2.msra.mxu0 0.0
    %125 = vmatprep.mubr.f32.mxu0 0.0
    %126 = vmatmul.mubr.f32.gmra.mxu0 %v59
    %v127 = vpop.f32.mrf.mxu0
    %v128 = vadd.f32 %v55, %v127
    %v129 = vpop.f32.mrf.mxu0
    %130 = vdwg.mxu0
    %v131 = vmax.f32 %v128, 0.0
    %132 = vst [vmem:[#allocation7] sm:$0xff] %v131
    // Predicated region
    $region22: #{tpu_custom_call.1} parent=1 // pred_check
      _
    $region23: #{tpu_custom_call.1} parent=1 // pred_check_branch
      %134 = sbr.rel (0) target = $region25
    $region24: #{tpu_custom_call.1} parent=1 // pred_region
      %s136 = ssub.s32 128, 128
      %137 = vsyncadd [#allocation4], %s136
      %s139 = sshll.u32 [#allocation7], 4
      %s140 = int_to_ptr.vmem [resolvable:$true] %s139
      %142 = dma.vmem_to_hbm [thread:$0]  %s140, 128, %s3, [#allocation4]
    $region25: #{tpu_custom_call.1} parent=1 // pred_fallthru
      _
    // Predicated region
    $region26: #{tpu_custom_call.1} parent=1 // pred_check
      _
    $region27: #{tpu_custom_call.1} parent=1 // pred_check_branch
      %144 = sbr.rel (0) target = $region29
    $region28: #{tpu_custom_call.1} parent=1 // pred_region
      %145 = dma.done [#allocation4], 128
    $region29: #{tpu_custom_call.1} parent=1 // pred_fallthru
      _
    %146 = vsyncpa [#allocation3], 1
    %147 = vsyncpa [#allocation6], 1
    %148 = vsyncpa [#allocation4], 1

</llo_original>
